<compile_context>
chip_gen: v5e
topology: v5e:2x2
jax: 0.10.0
libtpu: 0.0.40
codegen_flags: <defaults>
</compile_context>

<pallas_src>
import functools

import numpy as np
import jax
import jax.numpy as jnp
from jax.experimental import pallas as pl
from jax.experimental.pallas import tpu as pltpu


def _rup(x, m):
    return ((x + m - 1) // m) * m


def _pick_tile(dim, max_tile, unit):
    """Largest multiple of `unit` that divides `dim` (a multiple of unit) and is <= max_tile."""
    best = unit
    t = unit
    while t <= min(max_tile, dim):
        if dim % t == 0:
            best = t
        t += unit
    return best


# ----------------------------------------------------------------------------
# Pallas kernel 1: tiled bf16 matmul with fused per-column affine (+ optional ReLU)
# (used for 1x1 convs and the few strided convs via im2col)
# ----------------------------------------------------------------------------
def _matmul_affine_kernel(a_ref, b_ref, s_ref, c_ref, o_ref, acc_ref, *, relu):
    @pl.when(pl.program_id(2) == 0)
    def _init():
        acc_ref[...] = jnp.zeros_like(acc_ref)

    acc_ref[...] += jnp.dot(a_ref[...], b_ref[...],
                            preferred_element_type=jnp.float32)

    @pl.when(pl.program_id(2) == pl.num_programs(2) - 1)
    def _fin():
        y = acc_ref[...] * s_ref[...] + c_ref[...]
        if relu:
            y = jnp.maximum(y, 0.0)
        o_ref[...] = y.astype(o_ref.dtype)


@functools.partial(jax.jit, static_argnames=("relu", "out_dtype"))
def matmul_affine(a, b_p, s_p, c_p, *, relu=False, out_dtype=jnp.bfloat16):
    """a: (M, K); b_p: (Kp, Np) bf16 pre-padded; s_p/c_p: (1, Np) f32.
    Returns (M, Np) out_dtype (caller slices the valid columns)."""
    M, K = a.shape
    Kp, Np = b_p.shape
    Mp = _rup(M, 8)
    bm = _pick_tile(Mp, 256, 8)
    bk = _pick_tile(Kp, 1024, 128)
    bn = _pick_tile(Np, 512, 128)
    # Give the (parallel) M/N grid >= 2 blocks when cheaply possible (v7x dual TC).
    if Mp // bm == 1 and Np // bn == 1:
        if Np >= 256:
            bn = _pick_tile(Np, max(128, bn // 2), 128)
        elif Mp >= 16:
            bm = _pick_tile(Mp, max(8, bm // 2), 8)

    a_p = jnp.pad(a.astype(jnp.bfloat16), ((0, Mp - M), (0, Kp - K)))

    out = pl.pallas_call(
        functools.partial(_matmul_affine_kernel, relu=relu),
        out_shape=jax.ShapeDtypeStruct((Mp, Np), out_dtype),
        grid_spec=pltpu.PrefetchScalarGridSpec(
            num_scalar_prefetch=0,
            grid=(Mp // bm, Np // bn, Kp // bk),
            in_specs=[
                pl.BlockSpec((bm, bk), lambda i, j, k: (i, k)),
                pl.BlockSpec((bk, bn), lambda i, j, k: (k, j)),
                pl.BlockSpec((1, bn), lambda i, j, k: (0, j)),
                pl.BlockSpec((1, bn), lambda i, j, k: (0, j)),
            ],
            out_specs=pl.BlockSpec((bm, bn), lambda i, j, k: (i, j)),
            scratch_shapes=[pltpu.VMEM((bm, bn), jnp.float32)],
        ),
        compiler_params=pltpu.CompilerParams(
            dimension_semantics=("parallel", "parallel", "arbitrary")),
    )(a_p, b_p, s_p, c_p)
    return out[:M]


# ----------------------------------------------------------------------------
# Pallas kernel 2: fused KxK stride-1 conv (no im2col materialization)
# Input padded NHWC is read once per Cin tile; the kh*kw shifts + matmuls
# happen in VMEM; BN affine / ReLU fused in the epilogue.
# ----------------------------------------------------------------------------
def _conv_s1_kernel(x_ref, w_ref, s_ref, c_ref, o_ref, acc_ref, *,
                    kh, kw, dil, n, ho, wo, relu):
    k = pl.program_id(1)

    @pl.when(k == 0)
    def _init():
        acc_ref[...] = jnp.zeros_like(acc_ref)

    m = n * ho * wo
    part = None
    for ki in range(kh):
        for kj in range(kw):
            win = x_ref[:, pl.ds(ki * dil, ho), pl.ds(kj * dil, wo), :]
            a2 = win.reshape(m, -1)
            d = jnp.dot(a2, w_ref[ki * kw + kj],
                        preferred_element_type=jnp.float32)
            part = d if part is None else part + d
    acc_ref[...] += part

    @pl.when(k == pl.num_programs(1) - 1)
    def _fin():
        y = acc_ref[...] * s_ref[...] + c_ref[...]
        if relu:
            y = jnp.maximum(y, 0.0)
        o_ref[...] = y.reshape(o_ref.shape).astype(o_ref.dtype)


@functools.partial(jax.jit, static_argnames=("kh", "kw", "dilation", "padding",
                                              "relu", "out_dtype"))
def conv2d_s1_fused(x, w, scale, bias, *, kh, kw, dilation, padding, relu,
                    out_dtype=jnp.bfloat16):
    """Stride-1 KxK conv, NHWC. x: (N,H,W,Cin); w: (kh*kw, Cin, Cout) bf16."""
    N, H, W, Cin = x.shape
    Cout = w.shape[-1]
    Ho = H + 2 * padding - dilation * (kh - 1)
    Wo = W + 2 * padding - dilation * (kw - 1)
    Wo_p = _rup(Wo, 8)                          # sublane-aligned output width
    Hp = H + 2 * padding
    Wp = Wo_p + dilation * (kw - 1)             # padded width for Wo_p outputs
    pad_w_right = Wp - W - padding
    xp = jnp.pad(x.astype(jnp.bfloat16),
                 ((0, 0), (padding, padding), (padding, pad_w_right), (0, 0)))

    ck = Cin if Cin <= 512 else _pick_tile(Cin, 512, 128)
    bn = Cout if Cout < 256 else _pick_tile(Cout, max(128, Cout // 2), 128)
    s2 = scale.reshape(1, Cout)
    c2 = bias.reshape(1, Cout)

    out = pl.pallas_call(
        functools.partial(_conv_s1_kernel, kh=kh, kw=kw, dil=dilation,
                          n=N, ho=Ho, wo=Wo_p, relu=relu),
        out_shape=jax.ShapeDtypeStruct((N, Ho, Wo_p, Cout), out_dtype),
        grid_spec=pltpu.PrefetchScalarGridSpec(
            num_scalar_prefetch=0,
            grid=(Cout // bn, Cin // ck),
            in_specs=[
                pl.BlockSpec((N, Hp, Wp, ck), lambda j, k: (0, 0, 0, k)),
                pl.BlockSpec((kh * kw, ck, bn), lambda j, k: (0, k, j)),
                pl.BlockSpec((1, bn), lambda j, k: (0, j)),
                pl.BlockSpec((1, bn), lambda j, k: (0, j)),
            ],
            out_specs=pl.BlockSpec((N, Ho, Wo_p, bn), lambda j, k: (0, 0, 0, j)),
            scratch_shapes=[pltpu.VMEM((N * Ho * Wo_p, bn), jnp.float32)],
        ),
        compiler_params=pltpu.CompilerParams(
            dimension_semantics=("parallel", "arbitrary")),
    )(xp, w, s2, c2)
    return out[:, :, :Wo, :]


# ----------------------------------------------------------------------------
# Pallas kernel 3: 3x3/stride-2 max-pool as an elementwise max over 9 shifted views
# ----------------------------------------------------------------------------
def _max9_kernel(*refs):
    o_ref = refs[-1]
    m = refs[0][...]
    for r in refs[1:-1]:
        m = jnp.maximum(m, r[...])
    o_ref[...] = m


@jax.jit
def maxpool_3x3_s2_p1(x):  # x: (N, H, W, C)
    N, H, W, C = x.shape
    Ho = (H + 2 - 3) // 2 + 1
    Wo = (W + 2 - 3) // 2 + 1
    neg = float(jnp.finfo(x.dtype).min)
    xp = jnp.pad(x, ((0, 0), (1, 1), (1, 1), (0, 0)), constant_values=neg)
    M = N * Ho * Wo
    views = []
    for i in range(3):
        for j in range(3):
            v = xp[:, i:i + 2 * (Ho - 1) + 1:2, j:j + 2 * (Wo - 1) + 1:2, :]
            views.append(v.reshape(M, C))
    Mp = _rup(M, 8)
    bm = _pick_tile(Mp, 1024, 8)
    if Mp != M:
        views = [jnp.pad(v, ((0, Mp - M), (0, 0)), constant_values=neg)
                 for v in views]
    out = pl.pallas_call(
        _max9_kernel,
        out_shape=jax.ShapeDtypeStruct((Mp, C), x.dtype),
        grid=(Mp // bm,),
        in_specs=[pl.BlockSpec((bm, C), lambda i: (i, 0))] * 9,
        out_specs=pl.BlockSpec((bm, C), lambda i: (i, 0)),
    )(*views)
    return out[:M].reshape(N, Ho, Wo, C)


# ----------------------------------------------------------------------------
# Pallas kernel 4: residual add + ReLU (elementwise, bf16)
# ----------------------------------------------------------------------------
def _add_relu_kernel(a_ref, b_ref, o_ref):
    o_ref[...] = jnp.maximum(a_ref[...] + b_ref[...], 0).astype(o_ref.dtype)


@jax.jit
def add_relu(a, b):  # (N, H, W, C)
    shp = a.shape
    C = shp[-1]
    a2 = a.reshape(-1, C)
    b2 = b.reshape(-1, C)
    M = a2.shape[0]
    Mp = _rup(M, 8)
    bm = _pick_tile(Mp, 1024, 8)
    if Mp != M:
        a2 = jnp.pad(a2, ((0, Mp - M), (0, 0)))
        b2 = jnp.pad(b2, ((0, Mp - M), (0, 0)))
    out = pl.pallas_call(
        _add_relu_kernel,
        out_shape=jax.ShapeDtypeStruct((Mp, C), a.dtype),
        grid=(Mp // bm,),
        in_specs=[pl.BlockSpec((bm, C), lambda i: (i, 0)),
                  pl.BlockSpec((bm, C), lambda i: (i, 0))],
        out_specs=pl.BlockSpec((bm, C), lambda i: (i, 0)),
    )(a2, b2)
    return out[:M].reshape(shp)


# ----------------------------------------------------------------------------
# Pallas kernel 5: Softmax2d in channel-major layout (lane dim = spatial)
# ----------------------------------------------------------------------------
def _softmax_c_kernel(x_ref, o_ref):
    x = x_ref[...]                               # (1, C, bhw) f32
    m = jnp.max(x, axis=1, keepdims=True)
    e = jnp.exp(x - m)
    o_ref[...] = e / jnp.sum(e, axis=1, keepdims=True)


@jax.jit
def softmax_channels_nchw(x):                    # x: (N, C, H, W) f32
    N, C, H, W = x.shape
    HW = H * W
    x2 = x.reshape(N, C, HW).astype(jnp.float32)
    HWp = _rup(HW, 128)
    if HWp != HW:
        x2 = jnp.pad(x2, ((0, 0), (0, 0), (0, HWp - HW)))
    bhw = _pick_tile(HWp, 4096, 128)
    out = pl.pallas_call(
        _softmax_c_kernel,
        out_shape=jax.ShapeDtypeStruct((N, C, HWp), jnp.float32),
        grid=(N, HWp // bhw),
        in_specs=[pl.BlockSpec((1, C, bhw), lambda n, i: (n, 0, i))],
        out_specs=pl.BlockSpec((1, C, bhw), lambda n, i: (n, 0, i)),
    )(x2)
    return out[:, :, :HW].reshape(N, C, H, W)


# ----------------------------------------------------------------------------
# Conv dispatch: 1x1 / strided convs -> im2col + matmul kernel; 3x3 s1 -> fused
# ----------------------------------------------------------------------------
@functools.partial(jax.jit,
                   static_argnames=("kh", "kw", "stride", "dilation", "padding",
                                    "relu", "cout", "out_dtype"))
def conv2d_im2col(x, w_p, s_p, c_p, *, kh, kw, stride, dilation, padding, relu,
                  cout, out_dtype=jnp.bfloat16):
    N, H, W, Cin = x.shape
    Ho = (H + 2 * padding - dilation * (kh - 1) - 1) // stride + 1
    Wo = (W + 2 * padding - dilation * (kw - 1) - 1) // stride + 1
    x = x.astype(jnp.bfloat16)
    if kh == 1 and kw == 1 and stride == 1 and padding == 0:
        cols = x.reshape(N * H * W, Cin)
    else:
        xp = jnp.pad(x, ((0, 0), (padding, padding), (padding, padding), (0, 0)))
        pieces = []
        for i in range(kh):
            for j in range(kw):
                hi, wj = i * dilation, j * dilation
                pieces.append(xp[:, hi:hi + stride * (Ho - 1) + 1:stride,
                                    wj:wj + stride * (Wo - 1) + 1:stride, :])
        cols = jnp.concatenate(pieces, axis=-1).reshape(N * Ho * Wo, kh * kw * Cin)
    y = matmul_affine(cols, w_p, s_p, c_p, relu=relu, out_dtype=out_dtype)
    return y[:, :cout].reshape(N, Ho, Wo, cout)


def conv_bn(x, c, relu, out_dtype=jnp.bfloat16):
    if c["kind"] == "fused":
        return conv2d_s1_fused(x, c["w"], c["s"], c["b"], kh=c["k"], kw=c["k"],
                               dilation=c["dilation"], padding=c["padding"],
                               relu=relu, out_dtype=out_dtype)
    return conv2d_im2col(x, c["w"], c["s"], c["b"], kh=c["k"], kw=c["k"],
                         stride=c["stride"], dilation=c["dilation"],
                         padding=c["padding"], relu=relu, cout=c["cout"],
                         out_dtype=out_dtype)


# ----------------------------------------------------------------------------
# Bilinear upsample (align_corners=False): cached interp matrices + XLA einsum
# ----------------------------------------------------------------------------
@functools.lru_cache(maxsize=None)
def _interp_matrix_np(out_size, in_size):
    o = np.arange(out_size, dtype=np.float64)
    src = np.clip((o + 0.5) * (in_size / out_size) - 0.5, 0.0, in_size - 1.0)
    i0 = np.floor(src).astype(np.int64)
    i1 = np.minimum(i0 + 1, in_size - 1)
    lam = (src - i0).astype(np.float32)
    M = np.zeros((out_size, in_size), np.float32)
    M[np.arange(out_size), i0] += 1.0 - lam
    M[np.arange(out_size), i1] += lam
    return M


@functools.partial(jax.jit, static_argnames=("hout", "wout"))
def bilinear_upsample_nchw(x, *, hout, wout):    # x: (N, C, Hi, Wi) f32
    N, C, Hi, Wi = x.shape
    Wh = jnp.asarray(_interp_matrix_np(hout, Hi))
    Ww = jnp.asarray(_interp_matrix_np(wout, Wi))
    # TODO(synk): tiny-K interpolation matmuls left to XLA einsum (poor MXU fit for Pallas).
    y = jnp.einsum('hH,ncHW->nchW', Wh, x)
    return jnp.einsum('wW,nchW->nchw', Ww, y)


# ----------------------------------------------------------------------------
# Deterministic synthetic parameters (numpy RNG; eval-mode BN folded; bf16 weights
# pre-packed / pre-padded into the kernels' layouts at build time)
# ----------------------------------------------------------------------------
class ParamGen:
    def __init__(self, seed=0):
        self.rng = np.random.default_rng(seed)

    def conv_w(self, cin, cout, k):
        fan_in = cin * k * k
        return (self.rng.standard_normal((k * k, cin, cout)).astype(np.float32)
                / np.sqrt(fan_in))

    def bias(self, cout):
        return 0.01 * self.rng.standard_normal(cout).astype(np.float32)

    def bn(self, c):
        gamma = (1.0 + 0.1 * self.rng.standard_normal(c)).astype(np.float32)
        beta = (0.1 * self.rng.standard_normal(c)).astype(np.float32)
        mean = (0.1 * self.rng.standard_normal(c)).astype(np.float32)
        var = np.abs(1.0 + 0.1 * self.rng.standard_normal(c)).astype(np.float32)
        s = gamma / np.sqrt(var + 1e-5)
        b = beta - mean * s
        return s, b


def _pack_matmul_weight(w_np, s_np, b_np):
    """w_np: (K, Cout) f32 -> bf16 (Kp, Np); scale/bias -> f32 (1, Np)."""
    K, Cout = w_np.shape
    Kp, Np = _rup(K, 128), _rup(Cout, 128)
    w_p = np.zeros((Kp, Np), np.float32)
    w_p[:K, :Cout] = w_np
    s_p = np.zeros((1, Np), np.float32)
    s_p[0, :Cout] = s_np
    b_p = np.zeros((1, Np), np.float32)
    b_p[0, :Cout] = b_np
    return (jnp.asarray(w_p, dtype=jnp.bfloat16), jnp.asarray(s_p),
            jnp.asarray(b_p))


def make_conv_bn(pg, cin, cout, k, stride=1, dilation=1, padding=0):
    w = pg.conv_w(cin, cout, k)                 # ResNet convs have bias=False
    s, b = pg.bn(cout)
    if k > 1 and stride == 1:                   # fused stride-1 KxK path
        return dict(kind="fused", w=jnp.asarray(w, dtype=jnp.bfloat16),
                    s=jnp.asarray(s), b=jnp.asarray(b),
                    k=k, stride=1, dilation=dilation, padding=padding, cout=cout)
    w2 = w.reshape(k * k * cin, cout)
    w_p, s_p, b_p = _pack_matmul_weight(w2, s, b)
    return dict(kind="mm", w=w_p, s=s_p, b=b_p, k=k, stride=stride,
                dilation=dilation, padding=padding, cout=cout)


def build_fcn_params(pg, n_channels, n_classes):
    P = {}
    # TODO(synk): FwdConv is defined outside the given snippet; assumed Conv2d(1x1)+BN+ReLU.
    P["inconv"] = make_conv_bn(pg, n_channels, 3, 1) if n_channels != 3 else None
    P["conv1"] = make_conv_bn(pg, 3, 64, 7, stride=2, padding=3)
    # fcn_resnet101 backbone: blocks [3,4,23,3], replace_stride_with_dilation=[F,T,T]
    layers_cfg = [(64, 3, 1, False), (128, 4, 2, False),
                  (256, 23, 2, True), (512, 3, 2, True)]
    inplanes, dilation = 64, 1
    layers = []
    for planes, nblocks, stride, dilate in layers_cfg:
        prev_dil = dilation
        if dilate:
            dilation *= stride
            stride = 1
        down = None
        if stride != 1 or inplanes != planes * 4:
            down = make_conv_bn(pg, inplanes, planes * 4, 1, stride=stride)
        blocks = [dict(
            conv1=make_conv_bn(pg, inplanes, planes, 1),
            conv2=make_conv_bn(pg, planes, planes, 3, stride=stride,
                               dilation=prev_dil, padding=prev_dil),
            conv3=make_conv_bn(pg, planes, planes * 4, 1),
            down=down)]
        inplanes = planes * 4
        for _ in range(1, nblocks):
            blocks.append(dict(
                conv1=make_conv_bn(pg, inplanes, planes, 1),
                conv2=make_conv_bn(pg, planes, planes, 3, stride=1,
                                   dilation=dilation, padding=dilation),
                conv3=make_conv_bn(pg, planes, planes * 4, 1),
                down=None))
        layers.append(blocks)
    P["layers"] = layers
    # FCNHead: 3x3 conv 2048->512 + BN + ReLU + Dropout(0.1, identity at eval)
    P["head_conv"] = make_conv_bn(pg, 2048, 512, 3, padding=1)
    # classifier[-1] replaced with Conv2d(512, n_classes, 1) (has bias, no BN)
    w = pg.conv_w(512, n_classes, 1).reshape(512, n_classes)
    b = pg.bias(n_classes)
    w_p, s_p, b_p = _pack_matmul_weight(w, np.ones(n_classes, np.float32), b)
    P["head_cls"] = dict(kind="mm", w=w_p, s=s_p, b=b_p, k=1, stride=1,
                         dilation=1, padding=0, cout=n_classes)
    return P


# ----------------------------------------------------------------------------
# Forward pass
# ----------------------------------------------------------------------------
def bottleneck_forward(x, p):
    out = conv_bn(x, p["conv1"], relu=True)
    out = conv_bn(out, p["conv2"], relu=True)
    out = conv_bn(out, p["conv3"], relu=False)
    identity = conv_bn(x, p["down"], relu=False) if p["down"] is not None else x
    return add_relu(out, identity)


def fcn_forward(x_nchw, params):
    x = jnp.transpose(x_nchw, (0, 2, 3, 1)).astype(jnp.float32)  # NCHW -> NHWC
    N, H, W, _ = x.shape
    if params["inconv"] is not None:
        x = conv_bn(x, params["inconv"], relu=True)
    # ResNet stem
    x = conv_bn(x, params["conv1"], relu=True)
    x = maxpool_3x3_s2_p1(x)
    # layer1..layer4
    for layer in params["layers"]:
        for blk in layer:
            x = bottleneck_forward(x, blk)
    # FCNHead (Dropout(0.1) is identity in eval mode)
    x = conv_bn(x, params["head_conv"], relu=True)
    x = conv_bn(x, params["head_cls"], relu=False, out_dtype=jnp.float32)
    # channel-major (NCHW) for the upsample + Softmax2d (lane dim = spatial)
    x = jnp.transpose(x, (0, 3, 1, 2))
    x = bilinear_upsample_nchw(x, hout=H, wout=W)
    x = softmax_channels_nchw(x)
    return x  # NCHW


if __name__ == "__main__":
    N, n_channels, H, W = 2, 4, 16, 16
    n_classes = 6

    pg = ParamGen(seed=0)
    params = build_fcn_params(pg, n_channels, n_classes)

    x = jax.random.normal(jax.random.PRNGKey(0), (N, n_channels, H, W),
                          dtype=jnp.float32)
    y = fcn_forward(x, params)
    y = jax.block_until_ready(y)

    assert y.shape == (N, n_classes, H, W), y.shape
    assert bool(jnp.all(jnp.isfinite(y)))
    # Softmax2d: channel probabilities sum to 1 at every spatial location.
    assert bool(jnp.allclose(jnp.sum(y, axis=1), 1.0, atol=1e-3))
    print("KERNEL_OK")
</pallas_src>

<mosaic_0001>
module attributes {stable_mosaic.version = 11 : i64} {
  func.func @_matmul_affine_kernel(%arg0: i32, %arg1: i32, %arg2: i32, %arg3: memref<256x128xbf16, #tpu.memory_space<vmem>>, %arg4: memref<128x128xbf16, #tpu.memory_space<vmem>>, %arg5: memref<1x128xf32, #tpu.memory_space<vmem>>, %arg6: memref<1x128xf32, #tpu.memory_space<vmem>>, %arg7: memref<256x128xbf16, #tpu.memory_space<vmem>>, %arg8: memref<256x128xf32, #tpu.memory_space<vmem>>) attributes {dimension_semantics = [#tpu.dimension_semantics<parallel>, #tpu.dimension_semantics<parallel>, #tpu.dimension_semantics<arbitrary>], iteration_bounds = array<i64: 2, 1, 1>, scalar_prefetch = 0 : i64, scratch_operands = 1 : i64, tpu.core_type = #tpu.core_type<tc>, window_params = [{transform_indices = @transform_0, window_bounds = array<i64: 256, 128>}, {transform_indices = @transform_1, window_bounds = array<i64: 128, 128>}, {transform_indices = @transform_2, window_bounds = array<i64: 1, 128>}, {transform_indices = @transform_3, window_bounds = array<i64: 1, 128>}, {transform_indices = @transform_4, window_bounds = array<i64: 256, 128>}]} {
    %c0_i32 = arith.constant 0 : i32
    %0 = arith.cmpi eq, %arg2, %c0_i32 : i32
    %1 = arith.extui %0 : i1 to i32
    %c0_i32_0 = arith.constant 0 : i32
    %2 = arith.cmpi ne, %1, %c0_i32_0 : i32
    scf.if %2 {
      %cst_10 = arith.constant 0.000000e+00 : f32
      %12 = vector.broadcast %cst_10 : f32 to vector<256x128xf32>
      %c0_11 = arith.constant 0 : index
      %c0_12 = arith.constant 0 : index
      %13 = vector.load %arg8[%c0_11, %c0_12] : memref<256x128xf32, #tpu.memory_space<vmem>>, vector<256x128xf32>
      tpu.vector_store %arg8[%c0_11, %c0_12], %12 {strides = array<i32>} : memref<256x128xf32, #tpu.memory_space<vmem>>, vector<256x128xf32>,
    } else {
    }
    %c0 = arith.constant 0 : index
    %c0_1 = arith.constant 0 : index
    %3 = vector.load %arg8[%c0, %c0_1] : memref<256x128xf32, #tpu.memory_space<vmem>>, vector<256x128xf32>
    %c0_2 = arith.constant 0 : index
    %c0_3 = arith.constant 0 : index
    %4 = vector.load %arg3[%c0_2, %c0_3] : memref<256x128xbf16, #tpu.memory_space<vmem>>, vector<256x128xbf16>
    %c0_4 = arith.constant 0 : index
    %c0_5 = arith.constant 0 : index
    %5 = vector.load %arg4[%c0_4, %c0_5] : memref<128x128xbf16, #tpu.memory_space<vmem>>, vector<128x128xbf16>
    %cst = arith.constant dense<0.000000e+00> : vector<256x128xf32>
    %6 = tpu.matmul %4, %5, %cst {dimension_numbers = #tpu.dot_dimension_numbers<[1], [0], [0], [1], [0, 0, 1, 1], [], []>} : vector<256x128xbf16>, vector<128x128xbf16>, vector<256x128xf32> -> vector<256x128xf32>
    %7 = arith.addf %3, %6 : vector<256x128xf32>
    %c0_6 = arith.constant 0 : index
    %c0_7 = arith.constant 0 : index
    %8 = vector.load %arg8[%c0_6, %c0_7] : memref<256x128xf32, #tpu.memory_space<vmem>>, vector<256x128xf32>
    tpu.vector_store %arg8[%c0_6, %c0_7], %7 {strides = array<i32>} : memref<256x128xf32, #tpu.memory_space<vmem>>, vector<256x128xf32>,
    %c0_i32_8 = arith.constant 0 : i32
    %9 = arith.cmpi eq, %arg2, %c0_i32_8 : i32
    %10 = arith.extui %9 : i1 to i32
    %c0_i32_9 = arith.constant 0 : i32
    %11 = arith.cmpi ne, %10, %c0_i32_9 : i32
    scf.if %11 {
      %c0_10 = arith.constant 0 : index
      %c0_11 = arith.constant 0 : index
      %12 = vector.load %arg8[%c0_10, %c0_11] : memref<256x128xf32, #tpu.memory_space<vmem>>, vector<256x128xf32>
      %c0_12 = arith.constant 0 : index
      %c0_13 = arith.constant 0 : index
      %13 = vector.load %arg5[%c0_12, %c0_13] : memref<1x128xf32, #tpu.memory_space<vmem>>, vector<1x128xf32>
      %14 = vector.broadcast %13 : vector<1x128xf32> to vector<256x128xf32>
      %15 = arith.mulf %12, %14 : vector<256x128xf32>
      %c0_14 = arith.constant 0 : index
      %c0_15 = arith.constant 0 : index
      %16 = vector.load %arg6[%c0_14, %c0_15] : memref<1x128xf32, #tpu.memory_space<vmem>>, vector<1x128xf32>
      %17 = vector.broadcast %16 : vector<1x128xf32> to vector<256x128xf32>
      %18 = arith.addf %15, %17 : vector<256x128xf32>
      %cst_16 = arith.constant 0.000000e+00 : f32
      %19 = vector.broadcast %cst_16 : f32 to vector<256x128xf32>
      %20 = arith.maximumf %18, %19 : vector<256x128xf32>
      %21 = arith.truncf %20 : vector<256x128xf32> to vector<256x128xbf16>
      %c0_17 = arith.constant 0 : index
      %c0_18 = arith.constant 0 : index
      %22 = vector.load %arg7[%c0_17, %c0_18] : memref<256x128xbf16, #tpu.memory_space<vmem>>, vector<256x128xbf16>
      tpu.vector_store %arg7[%c0_17, %c0_18], %21 {strides = array<i32>} : memref<256x128xbf16, #tpu.memory_space<vmem>>, vector<256x128xbf16>,
    } else {
    }
    return
  }
  func.func @transform_0(%arg0: i32, %arg1: i32, %arg2: i32) -> (i32, i32) {
    %c0_i32 = arith.constant 0 : i32
    return %arg0, %arg2 : i32, i32
  }
  func.func @transform_1(%arg0: i32, %arg1: i32, %arg2: i32) -> (i32, i32) {
    %c0_i32 = arith.constant 0 : i32
    return %arg2, %arg1 : i32, i32
  }
  func.func @transform_2(%arg0: i32, %arg1: i32, %arg2: i32) -> (i32, i32) {
    %c0_i32 = arith.constant 0 : i32
    %c0_i32_0 = arith.constant 0 : i32
    return %c0_i32, %arg1 : i32, i32
  }
  func.func @transform_3(%arg0: i32, %arg1: i32, %arg2: i32) -> (i32, i32) {
    %c0_i32 = arith.constant 0 : i32
    %c0_i32_0 = arith.constant 0 : i32
    return %c0_i32, %arg1 : i32, i32
  }
  func.func @transform_4(%arg0: i32, %arg1: i32, %arg2: i32) -> (i32, i32) {
    %c0_i32 = arith.constant 0 : i32
    return %arg0, %arg1 : i32, i32
  }
}

</mosaic_0001>

<llo_original>
// kernel: matmul_affine.1
$region0: #{matmul_affine.1}
  #allocation0 [shape = 'u32[]', space=smem, size = 0x4, offset = 0x4, fixed_abs, tag = 'smem constant byte address 0x4 - core index']
  #allocation1 [shape = 'u32[72,128]{1,0:T(1,128)}', space=vmem, size = 0x9000, scoped, tag = 'internal scratch']
  #allocation2 [shape = 'f32[256,128]{1,0:T(8,128)}', space=vmem, size = 0x20000, scoped, tag = 'scratch operand']
  %s0 = inlined_call_operand.vmem [shape: bf16[512,128], index: 0, kind: input, shape index: {}]
  %s1 = inlined_call_operand.vmem [shape: bf16[128,128], index: 1, kind: input, shape index: {}]
  %s2 = inlined_call_operand.vmem [shape: f32[1,128], index: 2, kind: input, shape index: {}]
  %s3 = inlined_call_operand.vmem [shape: f32[1,128], index: 3, kind: input, shape index: {}]
  %s4 = inlined_call_operand.hbm [shape: bf16[512,128], index: 4, kind: output, shape index: {}]
  %s5 = sld [smem:[#allocation0]]
  $region57: #{matmul_affine.1} parent=0
    _
  %s7 = ssub.s32 1, %s5
  %s8 = scalar_select 0, %s7, %s5
  $region1: #{matmul_affine.1} parent=0
    #allocation3 [shape = 'u8[131072]{0}', space=vmem, size = 0x20000, scoped, tag = 'output window, operand 0']
    #allocation4 [shape = 's32[2]{0}', space=sflag, size = 0x8, scoped, tag = 'scoped memory for matmul_affine.1']
    %9 = vsyncpa [#allocation4], 0
    %s10 = scalar_lea.sflag [#allocation4], 1
    %11 = vsyncpa %s10, 0
    loop: start=0, step=1, limit=4
    $region2: #{matmul_affine.1} parent=1 // loop_pre_header
      _
    $region3: #{matmul_affine.1} parent=1 // loop_header
      %s13 = sphi 0, %s17
      %p14 = scmp.ge.s32.totalorder %s13, 4
      %s20 = sphi 0, %s39
      %s21 = sphi 0, %s35
      %s22 = sphi 0, %s31
      %s23 = sphi 0, %s20
      %s24 = sphi 0, %s21
      %s25 = sphi 0, %s22
      %s26 = sphi 0, %s23
      %s27 = sphi 0, %s24
      %s28 = sphi 0, %s25
      %s44 = sphi 0, %s46
      %s47 = sphi 0, %s44
      %s48 = sphi 0, %s47
      %s64 = sphi 0, %s48
      %s72 = sphi 0, %s74
      %s75 = sphi 0, %s72
      %s76 = sphi 0, %s75
      %s92 = sphi 0, %s76
      %s98 = sphi 0, %s100
      %s101 = sphi 0, %s98
      %s102 = sphi 0, %s101
      %s118 = sphi 0, %s102
      %s124 = sphi 0, %s126
      %s127 = sphi 0, %s124
      %s128 = sphi 0, %s127
      %s144 = sphi 0, %s128
      %s152 = sphi 0, %s154
      %s155 = sphi 0, %s152
      %s156 = sphi 0, %s155
      %s172 = sphi 0, %s156
    $region4: #{matmul_affine.1} parent=1 // loop_header_branch
      %16 = sbr.rel (%p14) target = $region8
    $region5: #{matmul_affine.1} parent=1 // loop_body
      %s18 = ssub.s32 %s13, 1
      %s19 = ssub.s32 %s13, 2
      %s29 = sadd.s32 1, %s22
      %p30 = scmp.ge.s32.totalorder %s29, 1
      %s31 = scalar_select %p30, 0, %s29
      %s32 = sadd.s32 1, %s21
      %s33 = scalar_select %p30, %s32, %s21
      %p34 = scmp.ge.s32.totalorder %s33, 1
      %s35 = scalar_select %p34, 0, %s33
      %s36 = sadd.s32 1, %s20
      %s37 = scalar_select %p34, %s36, %s20
      %p38 = scmp.ge.s32.totalorder %s37, 2
      %s39 = scalar_select %p38, 0, %s37
      %s40 = ssub.s32 %s20, %s39
      %s41 = ssub.s32 %s22, %s31
      %s42 = sor.u32 %s40, %s41
      %p43 = scmp.eq.s32.totalorder %s42, 0
      %s45 = sadd.s32 %s44, 1
      %s46 = scalar_select %p43, %s44, %s45
      %p49 = pneg %p43
      %p50 = scmp.eq.s32.totalorder %s13, 1
      %p51 = por %p49, %p50
      %p52 = scmp.ne.s32.totalorder %s44, %s47
      %p53 = scmp.eq.s32.totalorder %s13, 0
      %p54 = por %p52, %p53
      %p55 = scmp.ne.s32.totalorder %s44, %s47
      %p56 = scmp.eq.s32.totalorder %s18, 1
      %p57 = por %p55, %p56
      %p58 = scmp.ne.s32.totalorder %s47, %s48
      %p59 = scmp.eq.s32.totalorder %s18, 0
      %p60 = por %p58, %p59
      %p61 = scmp.ne.s32.totalorder %s47, %s48
      %p62 = scmp.eq.s32.totalorder %s19, 1
      %p63 = por %p61, %p62
      %p65 = scmp.ne.s32.totalorder %s48, %s64
      %p66 = scmp.eq.s32.totalorder %s19, 0
      %p67 = por %p65, %p66
      %s68 = ssub.s32 %s22, %s31
      %s69 = ssub.s32 %s21, %s35
      %s70 = sor.u32 %s68, %s69
      %p71 = scmp.eq.s32.totalorder %s70, 0
      %s73 = sadd.s32 %s72, 1
      %s74 = scalar_select %p71, %s72, %s73
      %p77 = pneg %p71
      %p78 = scmp.eq.s32.totalorder %s13, 1
      %p79 = por %p77, %p78
      %p80 = scmp.ne.s32.totalorder %s72, %s75
      %p81 = scmp.eq.s32.totalorder %s13, 0
      %p82 = por %p80, %p81
      %p83 = scmp.ne.s32.totalorder %s72, %s75
      %p84 = scmp.eq.s32.totalorder %s18, 1
      %p85 = por %p83, %p84
      %p86 = scmp.ne.s32.totalorder %s75, %s76
      %p87 = scmp.eq.s32.totalorder %s18, 0
      %p88 = por %p86, %p87
      %p89 = scmp.ne.s32.totalorder %s75, %s76
      %p90 = scmp.eq.s32.totalorder %s19, 1
      %p91 = por %p89, %p90
      %p93 = scmp.ne.s32.totalorder %s76, %s92
      %p94 = scmp.eq.s32.totalorder %s19, 0
      %p95 = por %p93, %p94
      %s96 = ssub.s32 %s21, %s35
      %p97 = scmp.eq.s32.totalorder %s96, 0
      %s99 = sadd.s32 %s98, 1
      %s100 = scalar_select %p97, %s98, %s99
      %p103 = pneg %p97
      %p104 = scmp.eq.s32.totalorder %s13, 1
      %p105 = por %p103, %p104
      %p106 = scmp.ne.s32.totalorder %s98, %s101
      %p107 = scmp.eq.s32.totalorder %s13, 0
      %p108 = por %p106, %p107
      %p109 = scmp.ne.s32.totalorder %s98, %s101
      %p110 = scmp.eq.s32.totalorder %s18, 1
      %p111 = por %p109, %p110
      %p112 = scmp.ne.s32.totalorder %s101, %s102
      %p113 = scmp.eq.s32.totalorder %s18, 0
      %p114 = por %p112, %p113
      %p115 = scmp.ne.s32.totalorder %s101, %s102
      %p116 = scmp.eq.s32.totalorder %s19, 1
      %p117 = por %p115, %p116
      %p119 = scmp.ne.s32.totalorder %s102, %s118
      %p120 = scmp.eq.s32.totalorder %s19, 0
      %p121 = por %p119, %p120
      %s122 = ssub.s32 %s21, %s35
      %p123 = scmp.eq.s32.totalorder %s122, 0
      %s125 = sadd.s32 %s124, 1
      %s126 = scalar_select %p123, %s124, %s125
      %p129 = pneg %p123
      %p130 = scmp.eq.s32.totalorder %s13, 1
      %p131 = por %p129, %p130
      %p132 = scmp.ne.s32.totalorder %s124, %s127
      %p133 = scmp.eq.s32.totalorder %s13, 0
      %p134 = por %p132, %p133
      %p135 = scmp.ne.s32.totalorder %s124, %s127
      %p136 = scmp.eq.s32.totalorder %s18, 1
      %p137 = por %p135, %p136
      %p138 = scmp.ne.s32.totalorder %s127, %s128
      %p139 = scmp.eq.s32.totalorder %s18, 0
      %p140 = por %p138, %p139
      %p141 = scmp.ne.s32.totalorder %s127, %s128
      %p142 = scmp.eq.s32.totalorder %s19, 1
      %p143 = por %p141, %p142
      %p145 = scmp.ne.s32.totalorder %s128, %s144
      %p146 = scmp.eq.s32.totalorder %s19, 0
      %p147 = por %p145, %p146
      %s148 = ssub.s32 %s20, %s39
      %s149 = ssub.s32 %s21, %s35
      %s150 = sor.u32 %s148, %s149
      %p151 = scmp.eq.s32.totalorder %s150, 0
      %s153 = sadd.s32 %s152, 1
      %s154 = scalar_select %p151, %s152, %s153
      %p157 = pneg %p151
      %p158 = scmp.eq.s32.totalorder %s13, 1
      %p159 = por %p157, %p158
      %p160 = scmp.ne.s32.totalorder %s152, %s155
      %p161 = scmp.eq.s32.totalorder %s13, 0
      %p162 = por %p160, %p161
      %p163 = scmp.ne.s32.totalorder %s152, %s155
      %p164 = scmp.eq.s32.totalorder %s18, 1
      %p165 = por %p163, %p164
      %p166 = scmp.ne.s32.totalorder %s155, %s156
      %p167 = scmp.eq.s32.totalorder %s18, 0
      %p168 = por %p166, %p167
      %p169 = scmp.ne.s32.totalorder %s155, %s156
      %p170 = scmp.eq.s32.totalorder %s19, 1
      %p171 = por %p169, %p170
      %p173 = scmp.ne.s32.totalorder %s156, %s172
      %p174 = scmp.eq.s32.totalorder %s19, 0
      %p175 = por %p173, %p174
      %p176 = scmp.le.s32.totalorder 1, %s13
      %p177 = scmp.lt.s32.totalorder %s13, 3
      %p178 = pnand %p176, %p177
      %p179 = pneg %p178
      // Predicated region
      $region9: #{matmul_affine.1} parent=5 // pred_check
        _
      $region10: #{matmul_affine.1} parent=5 // pred_check_branch
        %181 = sbr.rel (%p178) target = $region12
      $region11: #{matmul_affine.1} parent=5 // pred_region
        %s182 = ssub.s32 %s13, 1
        // Predicated region
        $region13: #{matmul_affine.1} parent=11 // pred_check
          %p183 = pneg %p88
        $region14: #{matmul_affine.1} parent=11 // pred_check_branch
          %185 = sbr.rel (%p183) target = $region16
        $region15: #{matmul_affine.1} parent=11 // pred_region
          %s186 = smul.u32 16, %s25
          %p187 = scmp.lt.s32.totalorder %s186, 15
          %s188 = scalar_select %p187, %s186, 15
          %p189 = scmp.lt.s32.totalorder %s24, 0
          %s190 = scalar_select %p189, %s24, 0
          %s191 = sadd.s32 %s190, %s188
          %s192 = smul.addr %s191, 4
          %s193 = scalar_lea.vmem %s1, %s192
          %s194 = smul.u32 16, %s25
        $region16: #{matmul_affine.1} parent=11 // pred_fallthru
          _
        // Predicated region
        $region17: #{matmul_affine.1} parent=11 // pred_check
          %p195 = pneg %p114
        $region18: #{matmul_affine.1} parent=11 // pred_check_branch
          %197 = sbr.rel (%p195) target = $region20
        $region19: #{matmul_affine.1} parent=11 // pred_region
          %p198 = scmp.lt.s32.totalorder %s24, 0
          %s199 = scalar_select %p198, %s24, 0
          %s200 = scalar_lea.vmem %s2, %s199
        $region20: #{matmul_affine.1} parent=11 // pred_fallthru
          _
        // Predicated region
        $region21: #{matmul_affine.1} parent=11 // pred_check
          %p201 = pneg %p140
        $region22: #{matmul_affine.1} parent=11 // pred_check_branch
          %203 = sbr.rel (%p201) target = $region24
        $region23: #{matmul_affine.1} parent=11 // pred_region
          %p204 = scmp.lt.s32.totalorder %s24, 0
          %s205 = scalar_select %p204, %s24, 0
          %s206 = scalar_lea.vmem %s3, %s205
        $region24: #{matmul_affine.1} parent=11 // pred_fallthru
          _
      $region12: #{matmul_affine.1} parent=5 // pred_fallthru
        _
      %p207 = scmp.lt.s32.totalorder %s13, 2
      // Predicated region
      $region25: #{matmul_affine.1} parent=5 // pred_check
        %p208 = pneg %p207
      $region26: #{matmul_affine.1} parent=5 // pred_check_branch
        %210 = sbr.rel (%p208) target = $region28
      $region27: #{matmul_affine.1} parent=5 // pred_region
        // Predicated region
        $region29: #{matmul_affine.1} parent=27 // pred_check
          %p211 = pneg %p54
        $region30: #{matmul_affine.1} parent=27 // pred_check_branch
          %213 = sbr.rel (%p211) target = $region32
        $region31: #{matmul_affine.1} parent=27 // pred_region
          %s214 = smul.u32 32, %s20
          %p215 = scmp.lt.s32.totalorder %s214, 63
          %s216 = scalar_select %p215, %s214, 63
          %p217 = scmp.lt.s32.totalorder %s22, 0
          %s218 = scalar_select %p217, %s22, 0
          %s219 = sadd.s32 %s218, %s216
          %s220 = smul.addr %s219, 4
          %s221 = scalar_lea.vmem %s0, %s220
          %s222 = smul.u32 32, %s20
        $region32: #{matmul_affine.1} parent=27 // pred_fallthru
          _
      $region28: #{matmul_affine.1} parent=5 // pred_fallthru
        _
      %p223 = scmp.le.s32.totalorder 1, %s13
      %p224 = scmp.lt.s32.totalorder %s13, 3
      %p225 = pnand %p223, %p224
      %p226 = pneg %p225
      // Predicated region
      $region33: #{matmul_affine.1} parent=5 // pred_check
        _
      $region34: #{matmul_affine.1} parent=5 // pred_check_branch
        %228 = sbr.rel (%p225) target = $region36
      $region35: #{matmul_affine.1} parent=5 // pred_region
        %s229 = ssub.s32 %s13, 1
        %s230 = smul.u32 32, %s23
        %p231 = scmp.lt.s32.totalorder %s230, 63
        %s232 = scalar_select %p231, %s230, 63
        %p233 = scmp.lt.s32.totalorder %s25, 0
        %s234 = scalar_select %p233, %s25, 0
        %s235 = sadd.s32 %s234, %s232
        %s236 = smul.addr %s235, 4
        %s237 = scalar_lea.vmem %s0, %s236
        %p238 = pneg %p60
        %p239 = pneg %p57
        %s240 = smul.u32 16, %s25
        %p241 = scmp.lt.s32.totalorder %s240, 15
        %s242 = scalar_select %p241, %s240, 15
        %p243 = scmp.lt.s32.totalorder %s24, 0
        %s244 = scalar_select %p243, %s24, 0
        %s245 = sadd.s32 %s244, %s242
        %s246 = smul.addr %s245, 4
        %s247 = scalar_lea.vmem %s1, %s246
        %p248 = pneg %p88
        %p249 = pneg %p85
        %p250 = scmp.lt.s32.totalorder %s24, 0
        %s251 = scalar_select %p250, %s24, 0
        %s252 = scalar_lea.vmem %s2, %s251
        %p253 = pneg %p114
        %p254 = pneg %p111
        %p255 = scmp.lt.s32.totalorder %s24, 0
        %s256 = scalar_select %p255, %s24, 0
        %s257 = scalar_lea.vmem %s3, %s256
        %p258 = pneg %p140
        %p259 = pneg %p137
        %p260 = pneg %p168
        %p261 = pneg %p165
        %s262 = sand.u32 %s155, 1
        %s263 = scalar_lea.sflag [#allocation4], %s262
        %s264 = sand.u32 %s155, 1
        %s265 = smul.addr %s264, 128
        %s266 = scalar_lea.vmem [#allocation3], %s265
        %s267 = smul.u32 32, %s23
        %p268 = scmp.lt.s32.totalorder %s267, 63
        %s269 = scalar_select %p268, %s267, 63
        %p270 = scmp.lt.s32.totalorder %s25, 0
        %s271 = scalar_select %p270, %s25, 0
        %s272 = sadd.s32 %s271, %s269
        %s273 = smul.addr %s272, 4
        %s274 = scalar_lea.vmem %s0, %s273
        %s275 = smul.u32 32, %s23
        %s276 = smul.u32 16, %s25
        %p277 = scmp.lt.s32.totalorder %s276, 15
        %s278 = scalar_select %p277, %s276, 15
        %p279 = scmp.lt.s32.totalorder %s24, 0
        %s280 = scalar_select %p279, %s24, 0
        %s281 = sadd.s32 %s280, %s278
        %s282 = smul.addr %s281, 4
        %s283 = scalar_lea.vmem %s1, %s282
        %s284 = smul.u32 16, %s25
        %p285 = scmp.lt.s32.totalorder %s24, 0
        %s286 = scalar_select %p285, %s24, 0
        %s287 = scalar_lea.vmem %s2, %s286
        %p288 = scmp.lt.s32.totalorder %s24, 0
        %s289 = scalar_select %p288, %s24, 0
        %s290 = scalar_lea.vmem %s3, %s289
        %s291 = smul.u32 32, %s23
        %p292 = scmp.eq.s32.totalorder %s25, 0
        // Predicated region
        $region37: #{matmul_affine.1} parent=35 // pred_check
          %p293 = pneg %p292
        $region38: #{matmul_affine.1} parent=35 // pred_check_branch
          %295 = sbr.rel (%p293) target = $region40
        $region39: #{matmul_affine.1} parent=35 // pred_region
          %296 = vst [vmem:[#allocation2] sm:$0xff] 0.0
          %297 = vst [vmem:[#allocation2 + $0x8] sm:$0xff] 0.0
          %298 = vst [vmem:[#allocation2 + $0x10] sm:$0xff] 0.0
          %299 = vst [vmem:[#allocation2 + $0x18] sm:$0xff] 0.0
          %300 = vst [vmem:[#allocation2 + $0x20] sm:$0xff] 0.0
          %301 = vst [vmem:[#allocation2 + $0x28] sm:$0xff] 0.0
          %302 = vst [vmem:[#allocation2 + $0x30] sm:$0xff] 0.0
          %303 = vst [vmem:[#allocation2 + $0x38] sm:$0xff] 0.0
          %304 = vst [vmem:[#allocation2 + $0x40] sm:$0xff] 0.0
          %305 = vst [vmem:[#allocation2 + $0x48] sm:$0xff] 0.0
          %306 = vst [vmem:[#allocation2 + $0x50] sm:$0xff] 0.0
          %307 = vst [vmem:[#allocation2 + $0x58] sm:$0xff] 0.0
          %308 = vst [vmem:[#allocation2 + $0x60] sm:$0xff] 0.0
          %309 = vst [vmem:[#allocation2 + $0x68] sm:$0xff] 0.0
          %310 = vst [vmem:[#allocation2 + $0x70] sm:$0xff] 0.0
          %311 = vst [vmem:[#allocation2 + $0x78] sm:$0xff] 0.0
          %312 = vst [vmem:[#allocation2 + $0x80] sm:$0xff] 0.0
          %313 = vst [vmem:[#allocation2 + $0x88] sm:$0xff] 0.0
          %314 = vst [vmem:[#allocation2 + $0x90] sm:$0xff] 0.0
          %315 = vst [vmem:[#allocation2 + $0x98] sm:$0xff] 0.0
          %316 = vst [vmem:[#allocation2 + $0xa0] sm:$0xff] 0.0
          %317 = vst [vmem:[#allocation2 + $0xa8] sm:$0xff] 0.0
          %318 = vst [vmem:[#allocation2 + $0xb0] sm:$0xff] 0.0
          %319 = vst [vmem:[#allocation2 + $0xb8] sm:$0xff] 0.0
          %320 = vst [vmem:[#allocation2 + $0xc0] sm:$0xff] 0.0
          %321 = vst [vmem:[#allocation2 + $0xc8] sm:$0xff] 0.0
          %322 = vst [vmem:[#allocation2 + $0xd0] sm:$0xff] 0.0
          %323 = vst [vmem:[#allocation2 + $0xd8] sm:$0xff] 0.0
          %324 = vst [vmem:[#allocation2 + $0xe0] sm:$0xff] 0.0
          %325 = vst [vmem:[#allocation2 + $0xe8] sm:$0xff] 0.0
          %326 = vst [vmem:[#allocation2 + $0xf0] sm:$0xff] 0.0
          %327 = vst [vmem:[#allocation2 + $0xf8] sm:$0xff] 0.0
        $region40: #{matmul_affine.1} parent=35 // pred_fallthru
          _
        %v328 = vld [vmem:[#allocation2] sm:$0xff]
        %v329 = vld [vmem:[#allocation2 + $0x8] sm:$0xff]
        %v330 = vld [vmem:[#allocation2 + $0x10] sm:$0xff]
        %v331 = vld [vmem:[#allocation2 + $0x18] sm:$0xff]
        %v332 = vld [vmem:[#allocation2 + $0x20] sm:$0xff]
        %v333 = vld [vmem:[#allocation2 + $0x28] sm:$0xff]
        %v334 = vld [vmem:[#allocation2 + $0x30] sm:$0xff]
        %v335 = vld [vmem:[#allocation2 + $0x38] sm:$0xff]
        %v336 = vld [vmem:[#allocation2 + $0x40] sm:$0xff]
        %v337 = vld [vmem:[#allocation2 + $0x48] sm:$0xff]
        %v338 = vld [vmem:[#allocation2 + $0x50] sm:$0xff]
        %v339 = vld [vmem:[#allocation2 + $0x58] sm:$0xff]
        %v340 = vld [vmem:[#allocation2 + $0x60] sm:$0xff]
        %v341 = vld [vmem:[#allocation2 + $0x68] sm:$0xff]
        %v342 = vld [vmem:[#allocation2 + $0x70] sm:$0xff]
        %v343 = vld [vmem:[#allocation2 + $0x78] sm:$0xff]
        %v344 = vld [vmem:[#allocation2 + $0x80] sm:$0xff]
        %v345 = vld [vmem:[#allocation2 + $0x88] sm:$0xff]
        %v346 = vld [vmem:[#allocation2 + $0x90] sm:$0xff]
        %v347 = vld [vmem:[#allocation2 + $0x98] sm:$0xff]
        %v348 = vld [vmem:[#allocation2 + $0xa0] sm:$0xff]
        %v349 = vld [vmem:[#allocation2 + $0xa8] sm:$0xff]
        %v350 = vld [vmem:[#allocation2 + $0xb0] sm:$0xff]
        %v351 = vld [vmem:[#allocation2 + $0xb8] sm:$0xff]
        %v352 = vld [vmem:[#allocation2 + $0xc0] sm:$0xff]
        %v353 = vld [vmem:[#allocation2 + $0xc8] sm:$0xff]
        %v354 = vld [vmem:[#allocation2 + $0xd0] sm:$0xff]
        %v355 = vld [vmem:[#allocation2 + $0xd8] sm:$0xff]
        %v356 = vld [vmem:[#allocation2 + $0xe0] sm:$0xff]
        %v357 = vld [vmem:[#allocation2 + $0xe8] sm:$0xff]
        %v358 = vld [vmem:[#allocation2 + $0xf0] sm:$0xff]
        %v359 = vld [vmem:[#allocation2 + $0xf8] sm:$0xff]
        %v360 = vld [vmem:[%s274] sm:$0xf]
        %v361 = vld [vmem:[%s274 + $0x4] sm:$0xf]
        %v362 = vld [vmem:[%s274 + $0x8] sm:$0xf]
        %v363 = vld [vmem:[%s274 + $0xc] sm:$0xf]
        %v364 = vld [vmem:[%s274 + $0x10] sm:$0xf]
        %v365 = vld [vmem:[%s274 + $0x14] sm:$0xf]
        %v366 = vld [vmem:[%s274 + $0x18] sm:$0xf]
        %v367 = vld [vmem:[%s274 + $0x1c] sm:$0xf]
        %v368 = vld [vmem:[%s274 + $0x20] sm:$0xf]
        %v369 = vld [vmem:[%s274 + $0x24] sm:$0xf]
        %v370 = vld [vmem:[%s274 + $0x28] sm:$0xf]
        %v371 = vld [vmem:[%s274 + $0x2c] sm:$0xf]
        %v372 = vld [vmem:[%s274 + $0x30] sm:$0xf]
        %v373 = vld [vmem:[%s274 + $0x34] sm:$0xf]
        %v374 = vld [vmem:[%s274 + $0x38] sm:$0xf]
        %v375 = vld [vmem:[%s274 + $0x3c] sm:$0xf]
        %v376 = vld [vmem:[%s274 + $0x40] sm:$0xf]
        %v377 = vld [vmem:[%s274 + $0x44] sm:$0xf]
        %v378 = vld [vmem:[%s274 + $0x48] sm:$0xf]
        %v379 = vld [vmem:[%s274 + $0x4c] sm:$0xf]
        %v380 = vld [vmem:[%s274 + $0x50] sm:$0xf]
        %v381 = vld [vmem:[%s274 + $0x54] sm:$0xf]
        %v382 = vld [vmem:[%s274 + $0x58] sm:$0xf]
        %v383 = vld [vmem:[%s274 + $0x5c] sm:$0xf]
        %v384 = vld [vmem:[%s274 + $0x60] sm:$0xf]
        %v385 = vld [vmem:[%s274 + $0x64] sm:$0xf]
        %v386 = vld [vmem:[%s274 + $0x68] sm:$0xf]
        %v387 = vld [vmem:[%s274 + $0x6c] sm:$0xf]
        %v388 = vld [vmem:[%s274 + $0x70] sm:$0xf]
        %v389 = vld [vmem:[%s274 + $0x74] sm:$0xf]
        %v390 = vld [vmem:[%s274 + $0x78] sm:$0xf]
        %v391 = vld [vmem:[%s274 + $0x7c] sm:$0xf]
        %v392 = vld [vmem:[%s283] sm:$0xf]
        %v393 = vld [vmem:[%s283 + $0x4] sm:$0xf]
        %v394 = vld [vmem:[%s283 + $0x8] sm:$0xf]
        %v395 = vld [vmem:[%s283 + $0xc] sm:$0xf]
        %v396 = vld [vmem:[%s283 + $0x10] sm:$0xf]
        %v397 = vld [vmem:[%s283 + $0x14] sm:$0xf]
        %v398 = vld [vmem:[%s283 + $0x18] sm:$0xf]
        %v399 = vld [vmem:[%s283 + $0x1c] sm:$0xf]
        %v400 = vld [vmem:[%s283 + $0x20] sm:$0xf]
        %v401 = vld [vmem:[%s283 + $0x24] sm:$0xf]
        %v402 = vld [vmem:[%s283 + $0x28] sm:$0xf]
        %v403 = vld [vmem:[%s283 + $0x2c] sm:$0xf]
        %v404 = vld [vmem:[%s283 + $0x30] sm:$0xf]
        %v405 = vld [vmem:[%s283 + $0x34] sm:$0xf]
        %v406 = vld [vmem:[%s283 + $0x38] sm:$0xf]
        %v407 = vld [vmem:[%s283 + $0x3c] sm:$0xf]
        %v440 = vunpack.c.l.b16 %v360
        %v441 = vunpack.c.l.b16 %v361
        %v442 = vunpack.c.l.b16 %v362
        %v443 = vunpack.c.l.b16 %v363
        %v444 = vunpack.c.l.b16 %v364
        %v445 = vunpack.c.l.b16 %v365
        %v446 = vunpack.c.l.b16 %v366
        %v447 = vunpack.c.l.b16 %v367
        %v448 = vunpack.c.l.b16 %v368
        %v449 = vunpack.c.l.b16 %v369
        %v450 = vunpack.c.l.b16 %v370
        %v451 = vunpack.c.l.b16 %v371
        %v452 = vunpack.c.l.b16 %v372
        %v453 = vunpack.c.l.b16 %v373
        %v454 = vunpack.c.l.b16 %v374
        %v455 = vunpack.c.l.b16 %v375
        %v456 = vunpack.c.l.b16 %v376
        %v457 = vunpack.c.l.b16 %v377
        %v458 = vunpack.c.l.b16 %v378
        %v459 = vunpack.c.l.b16 %v379
        %v460 = vunpack.c.l.b16 %v380
        %v461 = vunpack.c.l.b16 %v381
        %v462 = vunpack.c.l.b16 %v382
        %v463 = vunpack.c.l.b16 %v383
        %v464 = vunpack.c.l.b16 %v384
        %v465 = vunpack.c.l.b16 %v385
        %v466 = vunpack.c.l.b16 %v386
        %v467 = vunpack.c.l.b16 %v387
        %v468 = vunpack.c.l.b16 %v388
        %v469 = vunpack.c.l.b16 %v389
        %v470 = vunpack.c.l.b16 %v390
        %v471 = vunpack.c.l.b16 %v391
        %v472 = vpack.c.b16 %v441, %v440
        %v473 = vpack.c.b16 %v443, %v442
        %v474 = vpack.c.b16 %v445, %v444
        %v475 = vpack.c.b16 %v447, %v446
        %v476 = vpack.c.b16 %v449, %v448
        %v477 = vpack.c.b16 %v451, %v450
        %v478 = vpack.c.b16 %v453, %v452
        %v479 = vpack.c.b16 %v455, %v454
        %v480 = vpack.c.b16 %v457, %v456
        %v481 = vpack.c.b16 %v459, %v458
        %v482 = vpack.c.b16 %v461, %v460
        %v483 = vpack.c.b16 %v463, %v462
        %v484 = vpack.c.b16 %v465, %v464
        %v485 = vpack.c.b16 %v467, %v466
        %v486 = vpack.c.b16 %v469, %v468
        %v487 = vpack.c.b16 %v471, %v470
        %v520 = vunpack.c.l.b16 %v392
        %v521 = vunpack.c.l.b16 %v393
        %v522 = vunpack.c.l.b16 %v394
        %v523 = vunpack.c.l.b16 %v395
        %v524 = vunpack.c.l.b16 %v396
        %v525 = vunpack.c.l.b16 %v397
        %v526 = vunpack.c.l.b16 %v398
        %v527 = vunpack.c.l.b16 %v399
        %v528 = vunpack.c.l.b16 %v400
        %v529 = vunpack.c.l.b16 %v401
        %v530 = vunpack.c.l.b16 %v402
        %v531 = vunpack.c.l.b16 %v403
        %v532 = vunpack.c.l.b16 %v404
        %v533 = vunpack.c.l.b16 %v405
        %v534 = vunpack.c.l.b16 %v406
        %v535 = vunpack.c.l.b16 %v407
        %v536 = vpack.c.b16 %v521, %v520
        %v537 = vpack.c.b16 %v523, %v522
        %v538 = vpack.c.b16 %v525, %v524
        %v539 = vpack.c.b16 %v527, %v526
        %v540 = vpack.c.b16 %v529, %v528
        %v541 = vpack.c.b16 %v531, %v530
        %v542 = vpack.c.b16 %v533, %v532
        %v543 = vpack.c.b16 %v535, %v534
        %552 = vmatpush.bf16.msra.mxu0 %v543
        %553 = vmatpush.bf16.msra.mxu0 %v542
        %554 = vmatpush.bf16.msra.mxu0 %v541
        %555 = vmatpush.bf16.msra.mxu0 %v540
        %556 = vmatpush.bf16.msra.mxu0 %v539
        %557 = vmatpush.bf16.msra.mxu0 %v538
        %558 = vmatpush.bf16.msra.mxu0 %v537
        %559 = vmatpush.bf16.msra.mxu0 %v536
        %560 = vmatmul.bf16.gmra.mxu0 %v472
        %v561 = vpop.f32.mrf.mxu0
        %v562 = vadd.f32 0.0, %v561
        %v563 = vpop.f32.mrf.mxu0
        %v564 = vadd.f32 0.0, %v563
        %565 = vmatmul.bf16.gmra.mxu0 %v473
        %v566 = vpop.f32.mrf.mxu0
        %v567 = vadd.f32 0.0, %v566
        %v568 = vpop.f32.mrf.mxu0
        %v569 = vadd.f32 0.0, %v568
        %570 = vmatmul.bf16.gmra.mxu0 %v474
        %v571 = vpop.f32.mrf.mxu0
        %v572 = vadd.f32 0.0, %v571
        %v573 = vpop.f32.mrf.mxu0
        %v574 = vadd.f32 0.0, %v573
        %575 = vmatmul.bf16.gmra.mxu0 %v475
        %v576 = vpop.f32.mrf.mxu0
        %v577 = vadd.f32 0.0, %v576
        %v578 = vpop.f32.mrf.mxu0
        %v579 = vadd.f32 0.0, %v578
        %580 = vmatmul.bf16.gmra.mxu0 %v476
        %v581 = vpop.f32.mrf.mxu0
        %v582 = vadd.f32 0.0, %v581
        %v583 = vpop.f32.mrf.mxu0
        %v584 = vadd.f32 0.0, %v583
        %585 = vmatmul.bf16.gmra.mxu0 %v477
        %v586 = vpop.f32.mrf.mxu0
        %v587 = vadd.f32 0.0, %v586
        %v588 = vpop.f32.mrf.mxu0
        %v589 = vadd.f32 0.0, %v588
        %590 = vmatmul.bf16.gmra.mxu0 %v478
        %v591 = vpop.f32.mrf.mxu0
        %v592 = vadd.f32 0.0, %v591
        %v593 = vpop.f32.mrf.mxu0
        %v594 = vadd.f32 0.0, %v593
        %595 = vmatmul.bf16.gmra.mxu0 %v479
        %v596 = vpop.f32.mrf.mxu0
        %v597 = vadd.f32 0.0, %v596
        %v598 = vpop.f32.mrf.mxu0
        %v599 = vadd.f32 0.0, %v598
        %600 = vmatmul.bf16.gmra.mxu0 %v480
        %v601 = vpop.f32.mrf.mxu0
        %v602 = vadd.f32 0.0, %v601
        %v603 = vpop.f32.mrf.mxu0
        %v604 = vadd.f32 0.0, %v603
        %605 = vmatmul.bf16.gmra.mxu0 %v481
        %v606 = vpop.f32.mrf.mxu0
        %v607 = vadd.f32 0.0, %v606
        %v608 = vpop.f32.mrf.mxu0
        %v609 = vadd.f32 0.0, %v608
        %610 = vmatmul.bf16.gmra.mxu0 %v482
        %v611 = vpop.f32.mrf.mxu0
        %v612 = vadd.f32 0.0, %v611
        %v613 = vpop.f32.mrf.mxu0
        %v614 = vadd.f32 0.0, %v613
        %615 = vmatmul.bf16.gmra.mxu0 %v483
        %v616 = vpop.f32.mrf.mxu0
        %v617 = vadd.f32 0.0, %v616
        %v618 = vpop.f32.mrf.mxu0
        %v619 = vadd.f32 0.0, %v618
        %620 = vmatmul.bf16.gmra.mxu0 %v484
        %v621 = vpop.f32.mrf.mxu0
        %v622 = vadd.f32 0.0, %v621
        %v623 = vpop.f32.mrf.mxu0
        %v624 = vadd.f32 0.0, %v623
        %625 = vmatmul.bf16.gmra.mxu0 %v485
        %v626 = vpop.f32.mrf.mxu0
        %v627 = vadd.f32 0.0, %v626
        %v628 = vpop.f32.mrf.mxu0
        %v629 = vadd.f32 0.0, %v628
        %630 = vmatmul.bf16.gmra.mxu0 %v486
        %v631 = vpop.f32.mrf.mxu0
        %v632 = vadd.f32 0.0, %v631
        %v633 = vpop.f32.mrf.mxu0
        %v634 = vadd.f32 0.0, %v633
        %635 = vmatmul.bf16.gmra.mxu0 %v487
        %v636 = vpop.f32.mrf.mxu0
        %v637 = vadd.f32 0.0, %v636
        %v638 = vpop.f32.mrf.mxu0
        %v639 = vadd.f32 0.0, %v638
        %640 = vdwg.mxu0
        %v641 = vadd.f32 %v328, %v562
        %v642 = vadd.f32 %v329, %v564
        %v643 = vadd.f32 %v330, %v567
        %v644 = vadd.f32 %v331, %v569
        %v645 = vadd.f32 %v332, %v572
        %v646 = vadd.f32 %v333, %v574
        %v647 = vadd.f32 %v334, %v577
        %v648 = vadd.f32 %v335, %v579
        %v649 = vadd.f32 %v336, %v582
        %v650 = vadd.f32 %v337, %v584
        %v651 = vadd.f32 %v338, %v587
        %v652 = vadd.f32 %v339, %v589
        %v653 = vadd.f32 %v340, %v592
        %v654 = vadd.f32 %v341, %v594
        %v655 = vadd.f32 %v342, %v597
        %v656 = vadd.f32 %v343, %v599
        %v657 = vadd.f32 %v344, %v602
        %v658 = vadd.f32 %v345, %v604
        %v659 = vadd.f32 %v346, %v607
        %v660 = vadd.f32 %v347, %v609
        %v661 = vadd.f32 %v348, %v612
        %v662 = vadd.f32 %v349, %v614
        %v663 = vadd.f32 %v350, %v617
        %v664 = vadd.f32 %v351, %v619
        %v665 = vadd.f32 %v352, %v622
        %v666 = vadd.f32 %v353, %v624
        %v667 = vadd.f32 %v354, %v627
        %v668 = vadd.f32 %v355, %v629
        %v669 = vadd.f32 %v356, %v632
        %v670 = vadd.f32 %v357, %v634
        %v671 = vadd.f32 %v358, %v637
        %v672 = vadd.f32 %v359, %v639
        %673 = vst [vmem:[#allocation2] sm:$0xff] %v641
        %674 = vst [vmem:[#allocation2 + $0x8] sm:$0xff] %v642
        %675 = vst [vmem:[#allocation2 + $0x10] sm:$0xff] %v643
        %676 = vst [vmem:[#allocation2 + $0x18] sm:$0xff] %v644
        %677 = vst [vmem:[#allocation2 + $0x20] sm:$0xff] %v645
        %678 = vst [vmem:[#allocation2 + $0x28] sm:$0xff] %v646
        %679 = vst [vmem:[#allocation2 + $0x30] sm:$0xff] %v647
        %680 = vst [vmem:[#allocation2 + $0x38] sm:$0xff] %v648
        %681 = vst [vmem:[#allocation2 + $0x40] sm:$0xff] %v649
        %682 = vst [vmem:[#allocation2 + $0x48] sm:$0xff] %v650
        %683 = vst [vmem:[#allocation2 + $0x50] sm:$0xff] %v651
        %684 = vst [vmem:[#allocation2 + $0x58] sm:$0xff] %v652
        %685 = vst [vmem:[#allocation2 + $0x60] sm:$0xff] %v653
        %686 = vst [vmem:[#allocation2 + $0x68] sm:$0xff] %v654
        %687 = vst [vmem:[#allocation2 + $0x70] sm:$0xff] %v655
        %688 = vst [vmem:[#allocation2 + $0x78] sm:$0xff] %v656
        %689 = vst [vmem:[#allocation2 + $0x80] sm:$0xff] %v657
        %690 = vst [vmem:[#allocation2 + $0x88] sm:$0xff] %v658
        %691 = vst [vmem:[#allocation2 + $0x90] sm:$0xff] %v659
        %692 = vst [vmem:[#allocation2 + $0x98] sm:$0xff] %v660
        %693 = vst [vmem:[#allocation2 + $0xa0] sm:$0xff] %v661
        %694 = vst [vmem:[#allocation2 + $0xa8] sm:$0xff] %v662
        %695 = vst [vmem:[#allocation2 + $0xb0] sm:$0xff] %v663
        %696 = vst [vmem:[#allocation2 + $0xb8] sm:$0xff] %v664
        %697 = vst [vmem:[#allocation2 + $0xc0] sm:$0xff] %v665
        %698 = vst [vmem:[#allocation2 + $0xc8] sm:$0xff] %v666
        %699 = vst [vmem:[#allocation2 + $0xd0] sm:$0xff] %v667
        %700 = vst [vmem:[#allocation2 + $0xd8] sm:$0xff] %v668
        %701 = vst [vmem:[#allocation2 + $0xe0] sm:$0xff] %v669
        %702 = vst [vmem:[#allocation2 + $0xe8] sm:$0xff] %v670
        %703 = vst [vmem:[#allocation2 + $0xf0] sm:$0xff] %v671
        %704 = vst [vmem:[#allocation2 + $0xf8] sm:$0xff] %v672
        // Predicated region
        $region41: #{matmul_affine.1} parent=35 // pred_check
          %p705 = pneg %p292
        $region42: #{matmul_affine.1} parent=35 // pred_check_branch
          %707 = sbr.rel (%p705) target = $region44
        $region43: #{matmul_affine.1} parent=35 // pred_region
          %v708 = vld [vmem:[#allocation2] sm:$0xff]
          %v709 = vld [vmem:[#allocation2 + $0x8] sm:$0xff]
          %v710 = vld [vmem:[#allocation2 + $0x10] sm:$0xff]
          %v711 = vld [vmem:[#allocation2 + $0x18] sm:$0xff]
          %v712 = vld [vmem:[#allocation2 + $0x20] sm:$0xff]
          %v713 = vld [vmem:[#allocation2 + $0x28] sm:$0xff]
          %v714 = vld [vmem:[#allocation2 + $0x30] sm:$0xff]
          %v715 = vld [vmem:[#allocation2 + $0x38] sm:$0xff]
          %v716 = vld [vmem:[#allocation2 + $0x40] sm:$0xff]
          %v717 = vld [vmem:[#allocation2 + $0x48] sm:$0xff]
          %v718 = vld [vmem:[#allocation2 + $0x50] sm:$0xff]
          %v719 = vld [vmem:[#allocation2 + $0x58] sm:$0xff]
          %v720 = vld [vmem:[#allocation2 + $0x60] sm:$0xff]
          %v721 = vld [vmem:[#allocation2 + $0x68] sm:$0xff]
          %v722 = vld [vmem:[#allocation2 + $0x70] sm:$0xff]
          %v723 = vld [vmem:[#allocation2 + $0x78] sm:$0xff]
          %v724 = vld [vmem:[#allocation2 + $0x80] sm:$0xff]
          %v725 = vld [vmem:[#allocation2 + $0x88] sm:$0xff]
          %v726 = vld [vmem:[#allocation2 + $0x90] sm:$0xff]
          %v727 = vld [vmem:[#allocation2 + $0x98] sm:$0xff]
          %v728 = vld [vmem:[#allocation2 + $0xa0] sm:$0xff]
          %v729 = vld [vmem:[#allocation2 + $0xa8] sm:$0xff]
          %v730 = vld [vmem:[#allocation2 + $0xb0] sm:$0xff]
          %v731 = vld [vmem:[#allocation2 + $0xb8] sm:$0xff]
          %v732 = vld [vmem:[#allocation2 + $0xc0] sm:$0xff]
          %v733 = vld [vmem:[#allocation2 + $0xc8] sm:$0xff]
          %v734 = vld [vmem:[#allocation2 + $0xd0] sm:$0xff]
          %v735 = vld [vmem:[#allocation2 + $0xd8] sm:$0xff]
          %v736 = vld [vmem:[#allocation2 + $0xe0] sm:$0xff]
          %v737 = vld [vmem:[#allocation2 + $0xe8] sm:$0xff]
          %v738 = vld [vmem:[#allocation2 + $0xf0] sm:$0xff]
          %v739 = vld [vmem:[#allocation2 + $0xf8] sm:$0xff]
          %v740 = vld [vmem:[%s287] sm:$0x1]
          %v742 = vperm.slane %v740, 0
          %v744 = vmul.f32 %v708, %v742
          %v745 = vmul.f32 %v709, %v742
          %v746 = vmul.f32 %v710, %v742
          %v747 = vmul.f32 %v711, %v742
          %v748 = vmul.f32 %v712, %v742
          %v749 = vmul.f32 %v713, %v742
          %v750 = vmul.f32 %v714, %v742
          %v751 = vmul.f32 %v715, %v742
          %v752 = vmul.f32 %v716, %v742
          %v753 = vmul.f32 %v717, %v742
          %v754 = vmul.f32 %v718, %v742
          %v755 = vmul.f32 %v719, %v742
          %v756 = vmul.f32 %v720, %v742
          %v757 = vmul.f32 %v721, %v742
          %v758 = vmul.f32 %v722, %v742
          %v759 = vmul.f32 %v723, %v742
          %v760 = vmul.f32 %v724, %v742
          %v761 = vmul.f32 %v725, %v742
          %v762 = vmul.f32 %v726, %v742
          %v763 = vmul.f32 %v727, %v742
          %v764 = vmul.f32 %v728, %v742
          %v765 = vmul.f32 %v729, %v742
          %v766 = vmul.f32 %v730, %v742
          %v767 = vmul.f32 %v731, %v742
          %v768 = vmul.f32 %v732, %v742
          %v769 = vmul.f32 %v733, %v742
          %v770 = vmul.f32 %v734, %v742
          %v771 = vmul.f32 %v735, %v742
          %v772 = vmul.f32 %v736, %v742
          %v773 = vmul.f32 %v737, %v742
          %v774 = vmul.f32 %v738, %v742
          %v775 = vmul.f32 %v739, %v742
          %v776 = vld [vmem:[%s290] sm:$0x1]
          %v778 = vperm.slane %v776, 0
          %v780 = vadd.f32 %v744, %v778
          %v781 = vadd.f32 %v745, %v778
          %v782 = vadd.f32 %v746, %v778
          %v783 = vadd.f32 %v747, %v778
          %v784 = vadd.f32 %v748, %v778
          %v785 = vadd.f32 %v749, %v778
          %v786 = vadd.f32 %v750, %v778
          %v787 = vadd.f32 %v751, %v778
          %v788 = vadd.f32 %v752, %v778
          %v789 = vadd.f32 %v753, %v778
          %v790 = vadd.f32 %v754, %v778
          %v791 = vadd.f32 %v755, %v778
          %v792 = vadd.f32 %v756, %v778
          %v793 = vadd.f32 %v757, %v778
          %v794 = vadd.f32 %v758, %v778
          %v795 = vadd.f32 %v759, %v778
          %v796 = vadd.f32 %v760, %v778
          %v797 = vadd.f32 %v761, %v778
          %v798 = vadd.f32 %v762, %v778
          %v799 = vadd.f32 %v763, %v778
          %v800 = vadd.f32 %v764, %v778
          %v801 = vadd.f32 %v765, %v778
          %v802 = vadd.f32 %v766, %v778
          %v803 = vadd.f32 %v767, %v778
          %v804 = vadd.f32 %v768, %v778
          %v805 = vadd.f32 %v769, %v778
          %v806 = vadd.f32 %v770, %v778
          %v807 = vadd.f32 %v771, %v778
          %v808 = vadd.f32 %v772, %v778
          %v809 = vadd.f32 %v773, %v778
          %v810 = vadd.f32 %v774, %v778
          %v811 = vadd.f32 %v775, %v778
          %v812 = vmax.f32 %v780, 0.0
          %v813 = vmax.f32 %v781, 0.0
          %v814 = vmax.f32 %v782, 0.0
          %v815 = vmax.f32 %v783, 0.0
          %v816 = vmax.f32 %v784, 0.0
          %v817 = vmax.f32 %v785, 0.0
          %v818 = vmax.f32 %v786, 0.0
          %v819 = vmax.f32 %v787, 0.0
          %v820 = vmax.f32 %v788, 0.0
          %v821 = vmax.f32 %v789, 0.0
          %v822 = vmax.f32 %v790, 0.0
          %v823 = vmax.f32 %v791, 0.0
          %v824 = vmax.f32 %v792, 0.0
          %v825 = vmax.f32 %v793, 0.0
          %v826 = vmax.f32 %v794, 0.0
          %v827 = vmax.f32 %v795, 0.0
          %v828 = vmax.f32 %v796, 0.0
          %v829 = vmax.f32 %v797, 0.0
          %v830 = vmax.f32 %v798, 0.0
          %v831 = vmax.f32 %v799, 0.0
          %v832 = vmax.f32 %v800, 0.0
          %v833 = vmax.f32 %v801, 0.0
          %v834 = vmax.f32 %v802, 0.0
          %v835 = vmax.f32 %v803, 0.0
          %v836 = vmax.f32 %v804, 0.0
          %v837 = vmax.f32 %v805, 0.0
          %v838 = vmax.f32 %v806, 0.0
          %v839 = vmax.f32 %v807, 0.0
          %v840 = vmax.f32 %v808, 0.0
          %v841 = vmax.f32 %v809, 0.0
          %v842 = vmax.f32 %v810, 0.0
          %v843 = vmax.f32 %v811, 0.0
          %v844 = vpack.c.bf16 %v812, %v812
          %v845 = vpack.c.bf16 %v813, %v813
          %v846 = vpack.c.bf16 %v814, %v814
          %v847 = vpack.c.bf16 %v815, %v815
          %v848 = vpack.c.bf16 %v816, %v816
          %v849 = vpack.c.bf16 %v817, %v817
          %v850 = vpack.c.bf16 %v818, %v818
          %v851 = vpack.c.bf16 %v819, %v819
          %v852 = vpack.c.bf16 %v820, %v820
          %v853 = vpack.c.bf16 %v821, %v821
          %v854 = vpack.c.bf16 %v822, %v822
          %v855 = vpack.c.bf16 %v823, %v823
          %v856 = vpack.c.bf16 %v824, %v824
          %v857 = vpack.c.bf16 %v825, %v825
          %v858 = vpack.c.bf16 %v826, %v826
          %v859 = vpack.c.bf16 %v827, %v827
          %v860 = vpack.c.bf16 %v828, %v828
          %v861 = vpack.c.bf16 %v829, %v829
          %v862 = vpack.c.bf16 %v830, %v830
          %v863 = vpack.c.bf16 %v831, %v831
          %v864 = vpack.c.bf16 %v832, %v832
          %v865 = vpack.c.bf16 %v833, %v833
          %v866 = vpack.c.bf16 %v834, %v834
          %v867 = vpack.c.bf16 %v835, %v835
          %v868 = vpack.c.bf16 %v836, %v836
          %v869 = vpack.c.bf16 %v837, %v837
          %v870 = vpack.c.bf16 %v838, %v838
          %v871 = vpack.c.bf16 %v839, %v839
          %v872 = vpack.c.bf16 %v840, %v840
          %v873 = vpack.c.bf16 %v841, %v841
          %v874 = vpack.c.bf16 %v842, %v842
          %v875 = vpack.c.bf16 %v843, %v843
          %876 = vst [vmem:[%s266] sm:$0xf] %v844
          %877 = vst [vmem:[%s266 + $0x4] sm:$0xf] %v845
          %878 = vst [vmem:[%s266 + $0x8] sm:$0xf] %v846
          %879 = vst [vmem:[%s266 + $0xc] sm:$0xf] %v847
          %880 = vst [vmem:[%s266 + $0x10] sm:$0xf] %v848
          %881 = vst [vmem:[%s266 + $0x14] sm:$0xf] %v849
          %882 = vst [vmem:[%s266 + $0x18] sm:$0xf] %v850
          %883 = vst [vmem:[%s266 + $0x1c] sm:$0xf] %v851
          %884 = vst [vmem:[%s266 + $0x20] sm:$0xf] %v852
          %885 = vst [vmem:[%s266 + $0x24] sm:$0xf] %v853
          %886 = vst [vmem:[%s266 + $0x28] sm:$0xf] %v854
          %887 = vst [vmem:[%s266 + $0x2c] sm:$0xf] %v855
          %888 = vst [vmem:[%s266 + $0x30] sm:$0xf] %v856
          %889 = vst [vmem:[%s266 + $0x34] sm:$0xf] %v857
          %890 = vst [vmem:[%s266 + $0x38] sm:$0xf] %v858
          %891 = vst [vmem:[%s266 + $0x3c] sm:$0xf] %v859
          %892 = vst [vmem:[%s266 + $0x40] sm:$0xf] %v860
          %893 = vst [vmem:[%s266 + $0x44] sm:$0xf] %v861
          %894 = vst [vmem:[%s266 + $0x48] sm:$0xf] %v862
          %895 = vst [vmem:[%s266 + $0x4c] sm:$0xf] %v863
          %896 = vst [vmem:[%s266 + $0x50] sm:$0xf] %v864
          %897 = vst [vmem:[%s266 + $0x54] sm:$0xf] %v865
          %898 = vst [vmem:[%s266 + $0x58] sm:$0xf] %v866
          %899 = vst [vmem:[%s266 + $0x5c] sm:$0xf] %v867
          %900 = vst [vmem:[%s266 + $0x60] sm:$0xf] %v868
          %901 = vst [vmem:[%s266 + $0x64] sm:$0xf] %v869
          %902 = vst [vmem:[%s266 + $0x68] sm:$0xf] %v870
          %903 = vst [vmem:[%s266 + $0x6c] sm:$0xf] %v871
          %904 = vst [vmem:[%s266 + $0x70] sm:$0xf] %v872
          %905 = vst [vmem:[%s266 + $0x74] sm:$0xf] %v873
          %906 = vst [vmem:[%s266 + $0x78] sm:$0xf] %v874
          %907 = vst [vmem:[%s266 + $0x7c] sm:$0xf] %v875
        $region44: #{matmul_affine.1} parent=35 // pred_fallthru
          _
        %s908 = sand.u32 %s155, 1
        %s909 = scalar_lea.sflag [#allocation4], %s908
        %s910 = sand.u32 %s155, 1
        %s911 = smul.addr %s910, 128
        %s912 = scalar_lea.vmem [#allocation3], %s911
        // Predicated region
        $region45: #{matmul_affine.1} parent=35 // pred_check
          %p913 = pneg %p165
        $region46: #{matmul_affine.1} parent=35 // pred_check_branch
          %915 = sbr.rel (%p913) target = $region48
        $region47: #{matmul_affine.1} parent=35 // pred_region
          %s916 = smul.u32 32, %s23
          %918 = vsyncadd %s909, 0
          %s919 = sadd.s32 %s24, %s916
          %s920 = smul.addr %s919, 4
          %s921 = scalar_lea.hbm %s4, %s920
          %s922 = sshll.u32 %s912, 4
          %s923 = int_to_ptr.vmem [resolvable:$true] %s922
          %s924 = sshll.u32 %s921, 4
          %s925 = int_to_ptr.hbm [resolvable:$true] %s924
          %930 = dma.vmem_to_hbm [thread:$0]  %s923, 2048, %s925, %s909, 64, 64, 4
        $region48: #{matmul_affine.1} parent=35 // pred_fallthru
          _
      $region36: #{matmul_affine.1} parent=5 // pred_fallthru
        _
      %p931 = scmp.le.s32.totalorder 2, %s13
      // Predicated region
      $region49: #{matmul_affine.1} parent=5 // pred_check
        %p932 = pneg %p931
      $region50: #{matmul_affine.1} parent=5 // pred_check_branch
        %934 = sbr.rel (%p932) target = $region52
      $region51: #{matmul_affine.1} parent=5 // pred_region
        %s935 = ssub.s32 %s13, 2
        // Predicated region
        $region53: #{matmul_affine.1} parent=51 // pred_check
          %p936 = pneg %p171
        $region54: #{matmul_affine.1} parent=51 // pred_check_branch
          %938 = sbr.rel (%p936) target = $region56
        $region55: #{matmul_affine.1} parent=51 // pred_region
          %s939 = sand.u32 %s156, 1
          %s940 = scalar_lea.sflag [#allocation4], %s939
          %s941 = sand.u32 %s156, 1
          %s942 = smul.addr %s941, 128
          %s943 = scalar_lea.vmem [#allocation3], %s942
          %945 = dma.done %s940, 2048
        $region56: #{matmul_affine.1} parent=51 // pred_fallthru
          _
      $region52: #{matmul_affine.1} parent=5 // pred_fallthru
        _
    $region6: #{matmul_affine.1} parent=1 // loop_footer
      %s17 = sadd.s32 1, %s13
    $region7: #{matmul_affine.1} parent=1 // loop_footer_branch
      %12 = sbr.rel target = $region3
    $region8: #{matmul_affine.1} parent=1 // loop_exit
      _
    %946 = vsyncpa [#allocation4], 1
    %s947 = scalar_lea.sflag [#allocation4], 1
    %948 = vsyncpa %s947, 1

</llo_original>
